<compile_context>
chip_gen: v7x
topology: tpu7x:2x2x1
jax: 0.10.0
libtpu: 0.0.40
codegen_flags: <defaults>
</compile_context>

<pallas_src>
import functools
import math

import jax
import jax.numpy as jnp
from jax.experimental import pallas as pl
from jax.experimental.pallas import tpu as pltpu

BF16 = jnp.bfloat16
F32 = jnp.float32
_VMEM_LIMIT = 64 * 1024 * 1024


# ----------------------------------------------------------------------------
# helpers
# ----------------------------------------------------------------------------
def _pick_tile(dim, target, align):
    """Largest multiple of `align` <= target dividing dim, else full dim."""
    if dim <= target:
        return dim
    t = (target // align) * align
    while t >= align:
        if dim % t == 0:
            return t
        t -= align
    # Pathological (prime-ish) dims fall back to the full extent.
    return dim


def _pick_chunk(T, target=128):
    """T-chunk length: multiple of 8 dividing T (or T itself)."""
    if T <= target:
        return T
    t = (target // 8) * 8
    while t >= 8:
        if T % t == 0:
            return t
        t -= 8
    return T


# ----------------------------------------------------------------------------
# Kernel 1: tiled matmul (bf16 operands, f32 accumulation, optional LHS tanh).
# ----------------------------------------------------------------------------
def _matmul_kernel(a_ref, b_ref, o_ref, acc_ref, *, act_a):
    @pl.when(pl.program_id(2) == 0)
    def _():
        acc_ref[...] = jnp.zeros_like(acc_ref)

    lhs = a_ref[...]
    if act_a == "tanh":
        lhs = jnp.tanh(lhs.astype(F32))
    acc_ref[...] += jnp.dot(lhs.astype(BF16), b_ref[...],
                            preferred_element_type=F32)

    @pl.when(pl.program_id(2) == pl.num_programs(2) - 1)
    def _():
        o_ref[...] = acc_ref[...].astype(o_ref.dtype)


def pallas_matmul(a, b, out_dtype=BF16, act_a=None):
    M, K = a.shape
    K2, N = b.shape
    assert K == K2
    if b.dtype != BF16:
        b = b.astype(BF16)
    tm = _pick_tile(M, 512 if M >= 4096 else 256, 16)
    tn = _pick_tile(N, 256, 128)
    tk = _pick_tile(K, 512, 128)
    return pl.pallas_call(
        functools.partial(_matmul_kernel, act_a=act_a),
        out_shape=jax.ShapeDtypeStruct((M, N), out_dtype),
        grid=(M // tm, N // tn, K // tk),
        in_specs=[pl.BlockSpec((tm, tk), lambda i, j, k: (i, k)),
                  pl.BlockSpec((tk, tn), lambda i, j, k: (k, j))],
        out_specs=pl.BlockSpec((tm, tn), lambda i, j, k: (i, j)),
        scratch_shapes=[pltpu.VMEM((tm, tn), F32)],
        compiler_params=pltpu.CompilerParams(
            dimension_semantics=("parallel", "parallel", "arbitrary"),
            vmem_limit_bytes=_VMEM_LIMIT),
    )(a, b)


# ----------------------------------------------------------------------------
# Kernel 2: fused elementwise "mix" prologue.
#   slices r|k|v from the fused projection, GQA-repeats k/v via a 0/1 matmul,
#   computes w, a, the optional v_first blend, kk normalization, k update,
#   masked v, and the WKV a/b inputs (-kk, kk*a).  All outputs bf16.
# ----------------------------------------------------------------------------
def _mix_kernel(*args, C, kvC, has_vgate):
    if has_vgate:
        (seg_ref, segT_ref, rep_ref, cp_ref, rkv_ref, wl_ref, al_ref,
         vl_ref, vf_ref, mask_ref,
         r_o, w_o, k_o, v_o, vm_o, a_o, b_o) = args
    else:
        (seg_ref, segT_ref, rep_ref, cp_ref, rkv_ref, wl_ref, al_ref,
         mask_ref,
         r_o, w_o, k_o, v_o, vm_o, a_o, b_o) = args
        vl_ref = vf_ref = None

    def sig(z):
        return 1.0 / (1.0 + jnp.exp(-z))

    seg = seg_ref[...]        # (C, H) bf16 0/1
    segT = segT_ref[...]      # (H, C) bf16 0/1
    w0 = cp_ref[0:1, :]
    a0 = cp_ref[1:2, :]
    v0 = cp_ref[2:3, :]
    k_k = cp_ref[3:4, :]
    k_a = cp_ref[4:5, :]

    r_bf = rkv_ref[:, :C]                          # (t, C) bf16
    k_kv = rkv_ref[:, C:C + kvC]                   # (t, kvC) bf16
    v_kv = rkv_ref[:, C + kvC:C + 2 * kvC]
    rep = rep_ref[...]                             # (kvC, C) bf16 0/1
    k_full = jnp.dot(k_kv, rep, preferred_element_type=F32)   # GQA repeat
    v_full = jnp.dot(v_kv, rep, preferred_element_type=F32)

    # w = -softplus(-(w0 + w_lora)) - 0.6   (stable softplus)
    z = -(w0 + wl_ref[...].astype(F32))
    softplus = jnp.maximum(z, 0.0) + jnp.log(1.0 + jnp.exp(-jnp.abs(z)))
    w = -softplus - 0.6

    a = sig(a0 + al_ref[...].astype(F32))

    if has_vgate:
        gate = sig(v0 + vl_ref[...].astype(F32))
        v = v_full + (vf_ref[...].astype(F32) - v_full) * gate
    else:
        v = v_full

    # kk = L2-normalize(k * k_k) per head (segment sums via 0/1 matmuls)
    kk = k_full * k_k
    ss_h = jnp.dot((kk * kk).astype(BF16), seg, preferred_element_type=F32)
    inv_h = 1.0 / jnp.maximum(jnp.sqrt(ss_h), 1e-12)
    inv = jnp.dot(inv_h.astype(BF16), segT, preferred_element_type=F32)
    kk_n = kk * inv

    k_mod = k_full * (1.0 + (a - 1.0) * k_a)
    vm = v * mask_ref[...].astype(F32)             # masked v for the WKV path

    r_o[...] = r_bf
    w_o[...] = w.astype(BF16)
    k_o[...] = k_mod.astype(BF16)
    v_o[...] = v.astype(BF16)
    vm_o[...] = vm.astype(BF16)
    a_o[...] = (-kk_n).astype(BF16)
    b_o[...] = (kk_n * a).astype(BF16)


def pallas_mix(rkv, wl, al, vl, v_first, mask, chan, rep, seg, segT,
               C, kvC, has_vgate):
    B, T, _ = rkv.shape
    t_blk = _pick_chunk(T, target=64)

    def row(last):
        return pl.BlockSpec((None, t_blk, last), lambda b, t: (b, t, 0))

    def const2(arr):
        return pl.BlockSpec(arr.shape, lambda b, t: (0, 0))

    in_specs = [const2(seg), const2(segT), const2(rep), const2(chan),
                row(rkv.shape[-1]), row(C), row(C)]
    ops = [seg, segT, rep, chan, rkv, wl, al]
    if has_vgate:
        in_specs += [row(C), row(C)]
        ops += [vl, v_first]
    in_specs += [row(1)]
    ops += [mask]

    out_sh = jax.ShapeDtypeStruct((B, T, C), BF16)
    return pl.pallas_call(
        functools.partial(_mix_kernel, C=C, kvC=kvC, has_vgate=has_vgate),
        out_shape=(out_sh,) * 7,
        grid=(B, T // t_blk),
        in_specs=in_specs,
        out_specs=tuple(row(C) for _ in range(7)),
        compiler_params=pltpu.CompilerParams(
            dimension_semantics=("parallel", "parallel"),
            vmem_limit_bytes=_VMEM_LIMIT),
    )(*ops)


# ----------------------------------------------------------------------------
# Kernel 3: RWKV-7 recurrence, all heads of one batch in the lane dim.
#   state S[v, h*N + k] (N, C) fp32; per-step dots bf16-operand / f32-acc.
#   Output stored as (t_blk, N, H) (y_h directly); flat-C conversion is done
#   once in the wrapper.
# ----------------------------------------------------------------------------
def _wkv7_kernel(seg_ref, segT_ref, r_ref, w_ref, k_ref, a_ref, b_ref, v_ref,
                 o_ref, state_ref, wdec_ref, *, unroll):
    T_blk = r_ref.shape[0]

    @pl.when(pl.program_id(1) == 0)
    def _():
        state_ref[...] = jnp.zeros_like(state_ref)

    # decay hoisted out of the serial loop: one batched EUP pass per chunk.
    wdec_ref[...] = jnp.exp(-jnp.exp(w_ref[...].astype(F32)))

    seg = seg_ref[...]      # (C, H) bf16
    segT = segT_ref[...]    # (H, C) bf16

    def step(t, S):
        a_t = a_ref[pl.ds(t, 1), :].astype(F32)
        # sa uses the PRE-decay state (matches the official CUDA ordering)
        sa_h = jnp.dot((S * a_t).astype(BF16), seg,
                       preferred_element_type=F32)                  # (N, H)
        w_t = wdec_ref[pl.ds(t, 1), :]
        k_t = k_ref[pl.ds(t, 1), :].astype(F32)
        b_t = b_ref[pl.ds(t, 1), :].astype(F32)
        v_exp = jnp.dot(v_ref[t], segT, preferred_element_type=F32)  # (N, C)
        sa_exp = jnp.dot(sa_h.astype(BF16), segT,
                         preferred_element_type=F32)                 # (N, C)
        S = S * w_t + v_exp * k_t + sa_exp * b_t
        r_t = r_ref[pl.ds(t, 1), :].astype(F32)
        y_h = jnp.dot((S * r_t).astype(BF16), seg,
                      preferred_element_type=F32)                    # (N, H)
        o_ref[pl.ds(t, 1), :, :] = y_h[None, :, :].astype(o_ref.dtype)
        return S

    state_ref[...] = jax.lax.fori_loop(0, T_blk, step, state_ref[...],
                                       unroll=unroll)


def pallas_wkv7(r, w, k, v_nh, a, b, seg, segT, head_size):
    """r/w/k/a/b: (B,T,C) bf16; v_nh: (B,T,N,H) bf16.  Returns (B,T,N,H) bf16."""
    B, T, C = r.shape
    N = head_size
    H = C // N
    t_blk = _pick_chunk(T, target=128)
    row = pl.BlockSpec((None, t_blk, C), lambda bi, ti: (bi, ti, 0))
    nh = pl.BlockSpec((None, t_blk, N, H), lambda bi, ti: (bi, ti, 0, 0))

    def const2(arr):
        return pl.BlockSpec(arr.shape, lambda bi, ti: (0, 0))

    return pl.pallas_call(
        functools.partial(_wkv7_kernel, unroll=2),
        out_shape=jax.ShapeDtypeStruct((B, T, N, H), BF16),
        grid=(B, T // t_blk),
        in_specs=[const2(seg), const2(segT), row, row, row, row, row, nh],
        out_specs=nh,
        scratch_shapes=[pltpu.VMEM((N, C), F32),        # state (persists)
                        pltpu.VMEM((t_blk, C), F32)],    # per-chunk decays
        compiler_params=pltpu.CompilerParams(
            dimension_semantics=("parallel", "arbitrary"),
            vmem_limit_bytes=_VMEM_LIMIT),
    )(seg, segT, r, w, k, a, b, v_nh)


# ----------------------------------------------------------------------------
# Kernel 4: ln_x (GroupNorm, H groups, eps=0.00064) + (r*k*r_k).sum * v bonus.
# ----------------------------------------------------------------------------
def _post_kernel(seg_ref, segT_ref, x_ref, r_ref, k_ref, v_ref,
                 rk_ref, gw_ref, gb_ref, o_ref, *, N):
    seg = seg_ref[...]
    segT = segT_ref[...]
    inv_n = 1.0 / N

    x = x_ref[...].astype(F32)
    mean_h = jnp.dot(x_ref[...], seg, preferred_element_type=F32) * inv_n
    mean = jnp.dot(mean_h.astype(BF16), segT, preferred_element_type=F32)
    xc = x - mean
    var_h = jnp.dot((xc * xc).astype(BF16), seg,
                    preferred_element_type=F32) * inv_n
    inv_h = jax.lax.rsqrt(var_h + 0.00064)
    inv = jnp.dot(inv_h.astype(BF16), segT, preferred_element_type=F32)
    xn = xc * inv * gw_ref[...] + gb_ref[...]

    rk = r_ref[...].astype(F32) * k_ref[...].astype(F32) * rk_ref[...]
    s_h = jnp.dot(rk.astype(BF16), seg, preferred_element_type=F32)
    s = jnp.dot(s_h.astype(BF16), segT, preferred_element_type=F32)
    o_ref[...] = (xn + s * v_ref[...].astype(F32)).astype(o_ref.dtype)


def pallas_post(x, r, k, v, r_k_flat, gn_w, gn_b, seg, segT, head_size):
    B, T, C = x.shape
    t_blk = _pick_chunk(T, target=128)
    row = pl.BlockSpec((None, t_blk, C), lambda bi, ti: (bi, ti, 0))
    p1 = pl.BlockSpec((1, C), lambda bi, ti: (0, 0))

    def const2(arr):
        return pl.BlockSpec(arr.shape, lambda bi, ti: (0, 0))

    return pl.pallas_call(
        functools.partial(_post_kernel, N=head_size),
        out_shape=jax.ShapeDtypeStruct((B, T, C), BF16),
        grid=(B, T // t_blk),
        in_specs=[const2(seg), const2(segT), row, row, row, row, p1, p1, p1],
        out_specs=row,
        compiler_params=pltpu.CompilerParams(
            dimension_semantics=("parallel", "parallel"),
            vmem_limit_bytes=_VMEM_LIMIT),
    )(seg, segT, x, r, k, v, r_k_flat, gn_w, gn_b)


# ----------------------------------------------------------------------------
# Full forward (mirrors RWKV_Tmix_x070_Mose_cxa074.forward)
# ----------------------------------------------------------------------------
def rwkv_tmix_forward(p, x, v_first, attention_mask, layer_id):
    B, T, C = x.shape
    N = p["head_size"]
    H = C // N
    kvC = p["kv_dim"]
    Dd, Da, Dv = p["Dd"], p["Da"], p["Dv"]

    xf16 = x.reshape(B * T, C).astype(BF16)

    # fused r|k|v projection and fused w1|a1|v1 lora stage-1 (one pass each)
    rkv = pallas_matmul(xf16, p["Wrkv"], out_dtype=BF16)
    lora1 = pallas_matmul(xf16, p["Wlora1"], out_dtype=BF16)
    wl = pallas_matmul(lora1[:, :Dd], p["w2"], out_dtype=BF16, act_a="tanh")
    al = pallas_matmul(lora1[:, Dd:Dd + Da], p["a2"], out_dtype=BF16)
    has_vgate = layer_id != 0
    vl = (pallas_matmul(lora1[:, Dd + Da:Dd + Da + Dv], p["v2"],
                        out_dtype=BF16) if has_vgate else None)

    # TODO(synk): exact attention_mask handling inside RUN_CUDA_RWKV7g is not
    # public; we assume padded tokens contribute zero value (v *= mask).
    mask = attention_mask.astype(F32).reshape(B, T, 1)
    vl3 = vl.reshape(B, T, C) if has_vgate else None

    r, w, k, v, vm, a_in, b_in = pallas_mix(
        rkv.reshape(B, T, C + 2 * kvC), wl.reshape(B, T, C),
        al.reshape(B, T, C), vl3, v_first, mask,
        p["chan"], p["rep"], p["seg"], p["segT"], C, kvC, has_vgate)

    if layer_id == 0:
        v_first = v.astype(x.dtype)

    # glue transposes: channel layout (B,T,H,N) <-> kernel layout (B,T,N,H)
    vm_nh = jnp.transpose(vm.reshape(B, T, H, N), (0, 1, 3, 2))
    y_nh = pallas_wkv7(r, w, k, vm_nh, a_in, b_in, p["seg"], p["segT"], N)
    x_wkv = jnp.transpose(y_nh, (0, 1, 3, 2)).reshape(B, T, C)

    post = pallas_post(x_wkv, r, k, v, p["r_k"], p["gn_w"], p["gn_b"],
                       p["seg"], p["segT"], N)

    out = pallas_matmul(post.reshape(B * T, C), p["Wo"],
                        out_dtype=F32).reshape(B, T, C)
    return out, v_first


# ----------------------------------------------------------------------------
# Deterministic parameter construction (shapes per the module __init__).
# ----------------------------------------------------------------------------
def make_params(key, C, head_size, num_attention_heads, num_key_value_heads,
                layer_id, n_layer):
    N = head_size
    H = C // N
    D_DECAY = max(32, int(round(1.8 * C ** 0.5 / 32) * 32))
    D_AAA = max(32, int(round(1.8 * C ** 0.5 / 32) * 32))
    D_MV = max(32, int(round(1.3 * C ** 0.5 / 32) * 32))
    ratio_0_to_1 = layer_id / (n_layer - 1)

    attC = num_attention_heads * head_size
    kvC = num_key_value_heads * head_size
    n_rep = num_attention_heads // num_key_value_heads
    assert attC == C, "flat head layout assumes dim_att == n_embd"

    ks = jax.random.split(key, 12)
    rnd = lambda k, shape, s: (s * jax.random.normal(k, shape)).astype(F32)

    narr = jnp.arange(C, dtype=F32)
    decay_speed = -7.0 + 5.0 * (narr / (C - 1)) ** (0.85 + 1.0 * ratio_0_to_1 ** 0.5)

    w1 = rnd(ks[0], (C, D_DECAY), 0.05)
    w2 = rnd(ks[1], (D_DECAY, C), 0.10)
    a1 = rnd(ks[2], (C, D_AAA), 0.05)
    a2 = rnd(ks[3], (D_AAA, C), 0.10)
    v1 = rnd(ks[4], (C, D_MV), 0.05)
    v2 = rnd(ks[5], (D_MV, C), 0.10)
    # module zero-inits these Linear weights; small random values keep the
    # computation non-trivial.  Biases omitted (is_attention_bias=False).
    Wr = rnd(ks[6], (C, attC), 1.0 / math.sqrt(C))
    Wk = rnd(ks[7], (C, kvC), 1.0 / math.sqrt(C))
    Wv = rnd(ks[8], (C, kvC), 1.0 / math.sqrt(C))
    Wo = rnd(ks[9], (attC, C), 1.0 / math.sqrt(C))
    r_k = rnd(ks[10], (H, N), 0.10)

    # per-channel params packed into one (5, C) array: w0, a0, v0, k_k, k_a
    chan = jnp.stack([decay_speed + 0.5,
                      jnp.zeros((C,), F32),
                      jnp.ones((C,), F32),
                      0.85 * jnp.ones((C,), F32),
                      jnp.ones((C,), F32)], axis=0)

    # 0/1 segment matrices (exact in bf16) and the GQA head-repeat matrix.
    c_idx = jnp.arange(C, dtype=jnp.int32)
    h_idx = jnp.arange(H, dtype=jnp.int32)
    seg = (c_idx[:, None] // N == h_idx[None, :]).astype(BF16)    # (C, H)
    segT = (h_idx[:, None] == c_idx[None, :] // N).astype(BF16)   # (H, C)
    kv_idx = jnp.arange(kvC, dtype=jnp.int32)
    src = (c_idx // (N * n_rep)) * N + (c_idx % N)
    rep = (kv_idx[:, None] == src[None, :]).astype(BF16)          # (kvC, C)

    return {
        "head_size": N, "kv_dim": kvC,
        "Dd": D_DECAY, "Da": D_AAA, "Dv": D_MV,
        "Wrkv": jnp.concatenate([Wr, Wk, Wv], axis=1).astype(BF16),
        "Wlora1": jnp.concatenate([w1, a1, v1], axis=1).astype(BF16),
        "w2": w2.astype(BF16), "a2": a2.astype(BF16), "v2": v2.astype(BF16),
        "Wo": Wo.astype(BF16),
        "chan": chan,
        "r_k": r_k.reshape(1, C),
        "gn_w": jnp.ones((1, C), F32),
        "gn_b": jnp.zeros((1, C), F32),
        "seg": seg, "segT": segT, "rep": rep,
    }


if __name__ == "__main__":
    # small config consistent with the module:
    #   n_embd = dim_att = 64, head_size_a = 16 -> n_head = 4
    #   num_attention_heads = 4, num_key_value_heads = 2 (GQA repeat = 2)
    B, T, C = 2, 8, 64
    head_size = 16
    num_attention_heads = 4
    num_key_value_heads = 2
    layer_id, n_layer = 1, 4

    key = jax.random.PRNGKey(0)
    kp, kx, kv = jax.random.split(key, 3)
    params = make_params(kp, C, head_size, num_attention_heads,
                         num_key_value_heads, layer_id, n_layer)

    x = jax.random.normal(kx, (B, T, C), dtype=jnp.float32)
    v_first = jax.random.normal(kv, (B, T, C), dtype=jnp.float32)
    attention_mask = jnp.ones((B, T), dtype=jnp.float32).at[1, 6:].set(0.0)

    out, v_first_out = rwkv_tmix_forward(params, x, v_first, attention_mask,
                                         layer_id=layer_id)
    out = jax.block_until_ready(out)
    v_first_out = jax.block_until_ready(v_first_out)
    assert out.shape == (B, T, C) and v_first_out.shape == (B, T, C)
    assert bool(jnp.all(jnp.isfinite(out)))
    print("KERNEL_OK")
</pallas_src>

<mosaic_0001>
module attributes {stable_mosaic.version = 11 : i64} {
  func.func @_matmul_kernel(%arg0: i32, %arg1: i32, %arg2: i32, %arg3: memref<16x64xbf16, #tpu.memory_space<vmem>>, %arg4: memref<64x128xbf16, #tpu.memory_space<vmem>>, %arg5: memref<16x128xbf16, #tpu.memory_space<vmem>>, %arg6: memref<16x128xf32, #tpu.memory_space<vmem>>) attributes {dimension_semantics = [#tpu.dimension_semantics<parallel>, #tpu.dimension_semantics<parallel>, #tpu.dimension_semantics<arbitrary>], iteration_bounds = array<i64: 1, 1, 1>, scalar_prefetch = 0 : i64, scratch_operands = 1 : i64, tpu.core_type = #tpu.core_type<tc>, window_params = [{transform_indices = @transform_0, window_bounds = array<i64: 16, 64>}, {transform_indices = @transform_1, window_bounds = array<i64: 64, 128>}, {transform_indices = @transform_2, window_bounds = array<i64: 16, 128>}]} {
    %c0_i32 = arith.constant 0 : i32
    %0 = arith.cmpi eq, %arg2, %c0_i32 : i32
    %1 = arith.extui %0 : i1 to i32
    %c0_i32_0 = arith.constant 0 : i32
    %2 = arith.cmpi ne, %1, %c0_i32_0 : i32
    scf.if %2 {
      %cst_10 = arith.constant 0.000000e+00 : f32
      %12 = vector.broadcast %cst_10 : f32 to vector<16x128xf32>
      %c0_11 = arith.constant 0 : index
      %c0_12 = arith.constant 0 : index
      %13 = vector.load %arg6[%c0_11, %c0_12] : memref<16x128xf32, #tpu.memory_space<vmem>>, vector<16x128xf32>
      tpu.vector_store %arg6[%c0_11, %c0_12], %12 {strides = array<i32>} : memref<16x128xf32, #tpu.memory_space<vmem>>, vector<16x128xf32>,
    } else {
    }
    %c0 = arith.constant 0 : index
    %c0_1 = arith.constant 0 : index
    %3 = vector.load %arg3[%c0, %c0_1] : memref<16x64xbf16, #tpu.memory_space<vmem>>, vector<16x64xbf16>
    %c0_2 = arith.constant 0 : index
    %c0_3 = arith.constant 0 : index
    %4 = vector.load %arg6[%c0_2, %c0_3] : memref<16x128xf32, #tpu.memory_space<vmem>>, vector<16x128xf32>
    %c0_4 = arith.constant 0 : index
    %c0_5 = arith.constant 0 : index
    %5 = vector.load %arg4[%c0_4, %c0_5] : memref<64x128xbf16, #tpu.memory_space<vmem>>, vector<64x128xbf16>
    %cst = arith.constant dense<0.000000e+00> : vector<16x128xf32>
    %6 = tpu.matmul %3, %5, %cst {dimension_numbers = #tpu.dot_dimension_numbers<[1], [0], [0], [1], [0, 0, 1, 1], [], []>} : vector<16x64xbf16>, vector<64x128xbf16>, vector<16x128xf32> -> vector<16x128xf32>
    %7 = arith.addf %4, %6 : vector<16x128xf32>
    %c0_6 = arith.constant 0 : index
    %c0_7 = arith.constant 0 : index
    %8 = vector.load %arg6[%c0_6, %c0_7] : memref<16x128xf32, #tpu.memory_space<vmem>>, vector<16x128xf32>
    tpu.vector_store %arg6[%c0_6, %c0_7], %7 {strides = array<i32>} : memref<16x128xf32, #tpu.memory_space<vmem>>, vector<16x128xf32>,
    %c0_i32_8 = arith.constant 0 : i32
    %9 = arith.cmpi eq, %arg2, %c0_i32_8 : i32
    %10 = arith.extui %9 : i1 to i32
    %c0_i32_9 = arith.constant 0 : i32
    %11 = arith.cmpi ne, %10, %c0_i32_9 : i32
    scf.if %11 {
      %c0_10 = arith.constant 0 : index
      %c0_11 = arith.constant 0 : index
      %12 = vector.load %arg6[%c0_10, %c0_11] : memref<16x128xf32, #tpu.memory_space<vmem>>, vector<16x128xf32>
      %13 = arith.truncf %12 : vector<16x128xf32> to vector<16x128xbf16>
      %c0_12 = arith.constant 0 : index
      %c0_13 = arith.constant 0 : index
      %14 = vector.load %arg5[%c0_12, %c0_13] : memref<16x128xbf16, #tpu.memory_space<vmem>>, vector<16x128xbf16>
      tpu.vector_store %arg5[%c0_12, %c0_13], %13 {strides = array<i32>} : memref<16x128xbf16, #tpu.memory_space<vmem>>, vector<16x128xbf16>,
    } else {
    }
    return
  }
  func.func @transform_0(%arg0: i32, %arg1: i32, %arg2: i32) -> (i32, i32) {
    %c0_i32 = arith.constant 0 : i32
    return %arg0, %arg2 : i32, i32
  }
  func.func @transform_1(%arg0: i32, %arg1: i32, %arg2: i32) -> (i32, i32) {
    %c0_i32 = arith.constant 0 : i32
    return %arg2, %arg1 : i32, i32
  }
  func.func @transform_2(%arg0: i32, %arg1: i32, %arg2: i32) -> (i32, i32) {
    %c0_i32 = arith.constant 0 : i32
    return %arg0, %arg1 : i32, i32
  }
}

</mosaic_0001>

<llo_original>
// kernel: tpu_custom_call.1
$region0: #{tpu_custom_call.1}
  #allocation0 [shape = 'u32[]', space=smem, size = 0x4, offset = 0x4, fixed_abs, tag = 'smem constant byte address 0x4 - core index']
  #allocation1 [shape = 'u32[144,128]{1,0:T(1,128)}', space=vmem, size = 0x12000, scoped, tag = 'internal scratch']
  #allocation2 [shape = 'f32[16,128]{1,0:T(8,128)}', space=vmem, size = 0x2000, scoped, tag = 'scratch operand']
  %s0 = inlined_call_operand.hbm [shape: bf16[16,64], index: 0, kind: input, shape index: {}]
  %s1 = inlined_call_operand.hbm [shape: bf16[64,128], index: 1, kind: input, shape index: {}]
  %s2 = inlined_call_operand.hbm [shape: bf16[16,128], index: 2, kind: output, shape index: {}]
  %s3 = sld [smem:[#allocation0]]
  $region34: #{tpu_custom_call.1} parent=0
    _
  %s5 = ssub.s32 1, %s3
  %s6 = scalar_select 0, %s5, %s3
  $region1: #{tpu_custom_call.1} parent=0
    #allocation3 [shape = 'u8[4096]{0}', space=vmem, size = 0x1000, scoped, tag = 'input window, operand 0, single buffered']
    #allocation4 [shape = 's32[1]{0}', space=sflag, size = 0x4, scoped, tag = 'scoped memory for tpu_custom_call.1']
    #allocation5 [shape = 's32[1]{0}', space=sflag, size = 0x4, scoped, tag = 'scoped memory for tpu_custom_call.1']
    #allocation6 [shape = 'u8[16384]{0}', space=vmem, size = 0x4000, scoped, tag = 'input window, operand 1, single buffered']
    #allocation7 [shape = 's32[1]{0}', space=sflag, size = 0x4, scoped, tag = 'scoped memory for tpu_custom_call.1']
    #allocation8 [shape = 'u8[4096]{0}', space=vmem, size = 0x1000, scoped, tag = 'output window, operand 0, single buffered']
    %7 = vsyncpa [#allocation4], 0
    %8 = vsyncpa [#allocation7], 0
    %9 = vsyncpa [#allocation5], 0
    // Predicated region
    $region2: #{tpu_custom_call.1} parent=1 // pred_check
      _
    $region3: #{tpu_custom_call.1} parent=1 // pred_check_branch
      %11 = sbr.rel (0) target = $region5
    $region4: #{tpu_custom_call.1} parent=1 // pred_region
      %s13 = ssub.s32 128, 128
      %14 = vsyncadd [#allocation4], %s13
      %s15 = sshll.u32 [#allocation3], 4
      %s16 = int_to_ptr.vmem [resolvable:$true] %s15
      %21 = dma.hbm_to_vmem [thread:$0]  %s0, 128, %s16, [#allocation4], 64, 64, 4
    $region5: #{tpu_custom_call.1} parent=1 // pred_fallthru
      _
    // Predicated region
    $region6: #{tpu_custom_call.1} parent=1 // pred_check
      _
    $region7: #{tpu_custom_call.1} parent=1 // pred_check_branch
      %23 = sbr.rel (0) target = $region9
    $region8: #{tpu_custom_call.1} parent=1 // pred_region
      %s25 = ssub.s32 512, 512
      %26 = vsyncadd [#allocation7], %s25
      %s27 = sshll.u32 [#allocation6], 4
      %s28 = int_to_ptr.vmem [resolvable:$true] %s27
      %33 = dma.hbm_to_vmem [thread:$0]  %s1, 512, %s28, [#allocation7], 64, 64, 4
    $region9: #{tpu_custom_call.1} parent=1 // pred_fallthru
      _
    // Predicated region
    $region10: #{tpu_custom_call.1} parent=1 // pred_check
      _
    $region11: #{tpu_custom_call.1} parent=1 // pred_check_branch
      %35 = sbr.rel (0) target = $region13
    $region12: #{tpu_custom_call.1} parent=1 // pred_region
      %36 = dma.done [#allocation4], 128
    $region13: #{tpu_custom_call.1} parent=1 // pred_fallthru
      _
    // Predicated region
    $region14: #{tpu_custom_call.1} parent=1 // pred_check
      _
    $region15: #{tpu_custom_call.1} parent=1 // pred_check_branch
      %38 = sbr.rel (0) target = $region17
    $region16: #{tpu_custom_call.1} parent=1 // pred_region
      %39 = dma.done [#allocation7], 512
    $region17: #{tpu_custom_call.1} parent=1 // pred_fallthru
      _
    %p41 = scmp.eq.s32.totalorder 0, 0
    // Predicated region
    $region18: #{tpu_custom_call.1} parent=1 // pred_check
      %p42 = pneg %p41
    $region19: #{tpu_custom_call.1} parent=1 // pred_check_branch
      %44 = sbr.rel (%p42) target = $region21
    $region20: #{tpu_custom_call.1} parent=1 // pred_region
      %45 = vst [vmem:[#allocation2] sm:$0xff] 0.0
      %46 = vst [vmem:[#allocation2 + $0x8] sm:$0xff] 0.0
    $region21: #{tpu_custom_call.1} parent=1 // pred_fallthru
      _
    %v47 = vld [vmem:[#allocation3] sm:$0xf]
    %v48 = vld [vmem:[#allocation3 + $0x4] sm:$0xf]
    %v49 = vld [vmem:[#allocation2] sm:$0xff]
    %v50 = vld [vmem:[#allocation2 + $0x8] sm:$0xff]
    %v51 = vld [vmem:[#allocation6] sm:$0xf]
    %v52 = vld [vmem:[#allocation6 + $0x4] sm:$0xf]
    %v53 = vld [vmem:[#allocation6 + $0x8] sm:$0xf]
    %v54 = vld [vmem:[#allocation6 + $0xc] sm:$0xf]
    %v55 = vld [vmem:[#allocation6 + $0x10] sm:$0xf]
    %v56 = vld [vmem:[#allocation6 + $0x14] sm:$0xf]
    %v57 = vld [vmem:[#allocation6 + $0x18] sm:$0xf]
    %v58 = vld [vmem:[#allocation6 + $0x1c] sm:$0xf]
    %v61 = vunpack.c.l.b16 %v47
    %v62 = vunpack.c.l.b16 %v48
    %v63 = vpack.c.b16 %v62, %v61
    %v72 = vunpack.c.l.b16 %v51
    %v73 = vunpack.c.l.b16 %v52
    %v74 = vunpack.c.l.b16 %v53
    %v75 = vunpack.c.l.b16 %v54
    %v76 = vunpack.c.l.b16 %v55
    %v77 = vunpack.c.l.b16 %v56
    %v78 = vunpack.c.l.b16 %v57
    %v79 = vunpack.c.l.b16 %v58
    %v80 = vpack.c.b16 %v73, %v72
    %v81 = vpack.c.b16 %v75, %v74
    %v82 = vpack.c.b16 %v77, %v76
    %v83 = vpack.c.b16 %v79, %v78
    %vm88 = vcmask 523264
    %v90 = vsel %vm88, %v63, 0
    %92 = vmatprep.subr.bf16.mxu0 0
    %93 = vmatpush1.bf16.msra.mxu0 %v80
    %94 = vmatprep.subr.bf16.mxu0 0
    %95 = vmatpush1.bf16.msra.mxu0 %v81
    %96 = vmatprep.subr.bf16.mxu0 0
    %97 = vmatpush1.bf16.msra.mxu0 %v82
    %98 = vmatprep.subr.bf16.mxu0 0
    %99 = vmatpush1.bf16.msra.mxu0 %v83
    %100 = vmatprep.subr.bf16.mxu0 0
    %101 = vmatpush1.bf16.msra.mxu0 0
    %102 = vmatprep.subr.bf16.mxu0 0
    %103 = vmatpush1.bf16.msra.mxu0 0
    %104 = vmatprep.subr.bf16.mxu0 0
    %105 = vmatpush1.bf16.msra.mxu0 0
    %106 = vmatprep.subr.bf16.mxu0 0
    %107 = vmatpush1.bf16.msra.mxu0 0
    %108 = vmatprep.subr.bf16.mxu0 0
    %109 = vmatpush1.bf16.msra.mxu0 0
    %110 = vmatprep.subr.bf16.mxu0 0
    %111 = vmatpush1.bf16.msra.mxu0 0
    %112 = vmatprep.subr.bf16.mxu0 0
    %113 = vmatpush1.bf16.msra.mxu0 0
    %114 = vmatprep.subr.bf16.mxu0 0
    %115 = vmatpush1.bf16.msra.mxu0 0
    %116 = vmatprep.subr.bf16.mxu0 0
    %117 = vmatpush1.bf16.msra.mxu0 0
    %118 = vmatprep.subr.bf16.mxu0 0
    %119 = vmatpush1.bf16.msra.mxu0 0
    %120 = vmatprep.subr.bf16.mxu0 0
    %121 = vmatpush1.bf16.msra.mxu0 0
    %122 = vmatprep.subr.bf16.mxu0 0
    %123 = vmatpush1.bf16.msra.mxu0 0
    %124 = vmatprep.mubr.bf16.mxu0 0
    %125 = vmatmul.mubr.bf16.gmra.mrb[0].mxu0 %v90
    %v126 = vpop.f32.mrb[0].mxu0
    %v127 = vadd.f32 0.0, %v126
    %v128 = vpop.f32.mrb[0].mxu0
    %v129 = vpop.f32.mrb[0].mxu0
    %v130 = vadd.f32 0.0, %v129
    %v131 = vpop.f32.mrb[0].mxu0
    %132 = vdwg.mxu0
    %v133 = vadd.f32 %v49, %v127
    %v134 = vadd.f32 %v50, %v130
    %135 = vst [vmem:[#allocation2] sm:$0xff] %v133
    %136 = vst [vmem:[#allocation2 + $0x8] sm:$0xff] %v134
    // Predicated region
    $region22: #{tpu_custom_call.1} parent=1 // pred_check
      %p137 = pneg %p41
    $region23: #{tpu_custom_call.1} parent=1 // pred_check_branch
      %139 = sbr.rel (%p137) target = $region25
    $region24: #{tpu_custom_call.1} parent=1 // pred_region
      %v140 = vld [vmem:[#allocation2] sm:$0xff]
      %v141 = vld [vmem:[#allocation2 + $0x8] sm:$0xff]
      %v142 = vpack.c.bf16 %v141, %v140
      %v144 = vunpack.c.l.b16 %v142
      %v145 = vunpack.c.h.b16 %v142
      %v146 = vpack.c.b16 %v144, %v144
      %v147 = vpack.c.b16 %v145, %v145
      %150 = vst [vmem:[#allocation8] sm:$0xf] %v146
      %151 = vst [vmem:[#allocation8 + $0x4] sm:$0xf] %v147
    $region25: #{tpu_custom_call.1} parent=1 // pred_fallthru
      _
    // Predicated region
    $region26: #{tpu_custom_call.1} parent=1 // pred_check
      _
    $region27: #{tpu_custom_call.1} parent=1 // pred_check_branch
      %153 = sbr.rel (0) target = $region29
    $region28: #{tpu_custom_call.1} parent=1 // pred_region
      %s155 = ssub.s32 128, 128
      %156 = vsyncadd [#allocation5], %s155
      %s157 = sshll.u32 [#allocation8], 4
      %s158 = int_to_ptr.vmem [resolvable:$true] %s157
      %163 = dma.vmem_to_hbm [thread:$0]  %s158, 128, %s2, [#allocation5], 64, 64, 4
    $region29: #{tpu_custom_call.1} parent=1 // pred_fallthru
      _
    // Predicated region
    $region30: #{tpu_custom_call.1} parent=1 // pred_check
      _
    $region31: #{tpu_custom_call.1} parent=1 // pred_check_branch
      %165 = sbr.rel (0) target = $region33
    $region32: #{tpu_custom_call.1} parent=1 // pred_region
      %166 = dma.done [#allocation5], 128
    $region33: #{tpu_custom_call.1} parent=1 // pred_fallthru
      _
    %167 = vsyncpa [#allocation4], 1
    %168 = vsyncpa [#allocation7], 1
    %169 = vsyncpa [#allocation5], 1

</llo_original>
